<compile_context>
chip_gen: v7x
topology: tpu7x:2x2x1
jax: 0.10.0
libtpu: 0.0.40
codegen_flags: <defaults>
</compile_context>

<pallas_src>
from functools import partial

import jax
import jax.numpy as jnp
from jax.experimental import pallas as pl
from jax.experimental.pallas import tpu as pltpu

_PAD = 128  # zero margin (in lanes) around the flattened spatial axis in scratch


def _hardswish(x):
    # PyTorch nn.Hardswish: x * relu6(x + 3) / 6
    return x * jnp.clip(x + 3.0, 0.0, 6.0) * (1.0 / 6.0)


def _resblock_kernel(x_ref, w1_ref, b1_ref, wdw_ref, b2_ref, w2_ref, b3_ref,
                     o_ref, pad_ref, *, H, W):
    # x_ref  : (1, Cin,  H*W)   channels-first, lane-dense
    # w1_ref : (Chid, Cin)      1x1 conv (BN folded)
    # b1_ref : (Chid, 1)
    # wdw_ref: (9, Chid, 1)     depthwise 3x3 taps (BN folded), tap k = kh*3+kw
    # b2_ref : (Chid, 1)
    # w2_ref : (Cout, Chid)     1x1 conv (BN folded)
    # b3_ref : (Cout, 1)
    # o_ref  : (1, Cout, H*W)
    # pad_ref: (Chid, 2*_PAD + H*W) VMEM scratch with zero margins
    HW = H * W
    Chid = w1_ref.shape[0]

    x = x_ref[0]                                            # (Cin, HW)

    # ---- conv1 (1x1) + BN + Hardswish: one MXU matmul ----
    y = jnp.dot(w1_ref[...], x, preferred_element_type=jnp.float32)
    y = _hardswish(y + b1_ref[...])                         # (Chid, HW)

    # ---- depthwise 3x3 (stride 1, pad 1) + BN + Hardswish ----
    # Zero the margins, place y in the middle; each tap is then a plain
    # lane-offset slice read (XLU rotate, no strided relayout).
    pad_ref[:, :_PAD] = jnp.zeros((Chid, _PAD), jnp.float32)
    pad_ref[:, _PAD + HW:] = jnp.zeros((Chid, _PAD), jnp.float32)
    pad_ref[:, _PAD:_PAD + HW] = y

    wpos = jax.lax.broadcasted_iota(jnp.int32, (1, HW), 1) % W
    acc = jnp.zeros((Chid, HW), dtype=jnp.float32)
    for kh in range(3):
        for kw in range(3):
            dh, dw = kh - 1, kw - 1
            s = dh * W + dw                                  # static lane shift
            tap = pad_ref[:, _PAD + s:_PAD + s + HW]         # (Chid, HW)
            if dw != 0:
                # mask positions whose shifted column falls off the row
                valid = (wpos + dw >= 0) & (wpos + dw < W)
                tap = jnp.where(valid, tap, 0.0)
            coeff = wdw_ref[kh * 3 + kw]                     # (Chid, 1)
            acc = acc + tap * coeff
    y = _hardswish(acc + b2_ref[...])                        # (Chid, HW)

    # ---- conv2 (1x1) + BN (no activation) ----
    y = jnp.dot(w2_ref[...], y, preferred_element_type=jnp.float32) + b3_ref[...]

    # ---- residual add, lane-dense store (Cout, HW) ----
    o_ref[...] = (x + y).reshape(1, *o_ref.shape[1:]).astype(o_ref.dtype)


@jax.jit
def res_block(x, w1, bn1, w_dw, bn2, w2, bn3, eps=1e-5):
    """ResBlock forward (inference-mode BN).

    x    : (N, Cin, H, W) float32
    w1   : (Chid, Cin)        1x1 conv weight (no bias)
    w_dw : (Chid, 3, 3)       depthwise 3x3 weight (no bias)
    w2   : (Cout, Chid)       1x1 conv weight (no bias)
    bn*  : (gamma, beta, running_mean, running_var), each (channels,)
    returns (N, Cout, H, W)
    """
    N, Cin, H, W = x.shape
    Chid = w1.shape[0]
    Cout = w2.shape[0]
    assert Cout == Cin, "residual add requires out_features == in_features"
    HW = H * W

    def fold(w_oi, bn):
        gamma, beta, mean, var = bn
        s = gamma / jnp.sqrt(var + eps)
        return w_oi * s[:, None], (beta - mean * s).reshape(-1, 1)

    w1f, b1f = fold(w1, bn1)                               # (Chid,Cin), (Chid,1)
    wdwf, b2f = fold(w_dw.reshape(Chid, 9), bn2)           # (Chid,9),  (Chid,1)
    wdwf = wdwf.T.reshape(9, Chid, 1)                      # tap-major
    w2f, b3f = fold(w2, bn3)                               # (Cout,Chid),(Cout,1)

    # NCHW flattens directly to channels-first (N, C, H*W): no transpose.
    x_flat = x.reshape(N, Cin, HW)

    out_flat = pl.pallas_call(
        partial(_resblock_kernel, H=H, W=W),
        out_shape=jax.ShapeDtypeStruct((N, Cout, HW), x.dtype),
        grid_spec=pltpu.PrefetchScalarGridSpec(
            num_scalar_prefetch=0,
            grid=(N,),
            in_specs=[
                pl.BlockSpec((1, Cin, HW), lambda n: (n, 0, 0)),
                pl.BlockSpec((Chid, Cin), lambda n: (0, 0)),
                pl.BlockSpec((Chid, 1), lambda n: (0, 0)),
                pl.BlockSpec((9, Chid, 1), lambda n: (0, 0, 0)),
                pl.BlockSpec((Chid, 1), lambda n: (0, 0)),
                pl.BlockSpec((Cout, Chid), lambda n: (0, 0)),
                pl.BlockSpec((Cout, 1), lambda n: (0, 0)),
            ],
            out_specs=pl.BlockSpec((1, Cout, HW), lambda n: (n, 0, 0)),
            scratch_shapes=[pltpu.VMEM((Chid, 2 * _PAD + HW), jnp.float32)],
        ),
        compiler_params=pltpu.CompilerParams(
            dimension_semantics=("parallel",)   # 2 TCs on v7x split the batch
        ),
    )(x_flat, w1f, b1f, wdwf, b2f, w2f, b3f)

    return out_flat.reshape(N, Cout, H, W)


def _reference(x, w1, bn1, w_dw, bn2, w2, bn3, eps=1e-5):
    """Pure-JAX reference (lax convolutions, inference-mode BN)."""
    Chid = w1.shape[0]
    Cout = w2.shape[0]

    def bn(y, p):
        g, b, m, v = p
        s = g / jnp.sqrt(v + eps)
        return y * s[None, :, None, None] + (b - m * s)[None, :, None, None]

    hs = lambda z: z * jnp.clip(z + 3.0, 0.0, 6.0) / 6.0

    y = jax.lax.conv_general_dilated(
        x, w1.reshape(Chid, -1, 1, 1), (1, 1), "VALID",
        dimension_numbers=("NCHW", "OIHW", "NCHW"))
    y = hs(bn(y, bn1))
    y = jax.lax.conv_general_dilated(
        y, w_dw.reshape(Chid, 1, 3, 3), (1, 1), ((1, 1), (1, 1)),
        dimension_numbers=("NCHW", "OIHW", "NCHW"), feature_group_count=Chid)
    y = hs(bn(y, bn2))
    y = jax.lax.conv_general_dilated(
        y, w2.reshape(Cout, Chid, 1, 1), (1, 1), "VALID",
        dimension_numbers=("NCHW", "OIHW", "NCHW"))
    y = bn(y, bn3)
    return x + y


if __name__ == "__main__":
    # ResBlock(in_features=4): hidden = out = in = 4; spatial 16x16; batch 2.
    N, C, H, W = 2, 4, 16, 16
    Chid = C

    key = jax.random.PRNGKey(0)
    ks = jax.random.split(key, 8)

    x = jax.random.normal(ks[0], (N, C, H, W), dtype=jnp.float32)

    # Conv weights: normal(0, sqrt(2/fan_out)) as in the module init.
    w1 = jax.random.normal(ks[1], (Chid, C), jnp.float32) * (2.0 / Chid) ** 0.5
    w_dw = jax.random.normal(ks[2], (Chid, 3, 3), jnp.float32) * (2.0 / 9.0) ** 0.5
    w2 = jax.random.normal(ks[3], (C, Chid), jnp.float32) * (2.0 / C) ** 0.5

    def bn_params(k, ch):
        k1, k2, k3, k4 = jax.random.split(k, 4)
        gamma = jax.random.uniform(k1, (ch,), jnp.float32, 0.5, 1.5)
        beta = 0.1 * jax.random.normal(k2, (ch,), jnp.float32)
        mean = 0.1 * jax.random.normal(k3, (ch,), jnp.float32)
        var = jax.random.uniform(k4, (ch,), jnp.float32, 0.5, 1.5)
        return gamma, beta, mean, var

    bn1 = bn_params(ks[4], Chid)
    bn2 = bn_params(ks[5], Chid)
    bn3 = bn_params(ks[6], C)

    out = res_block(x, w1, bn1, w_dw, bn2, w2, bn3)
    out = jax.block_until_ready(out)

    ref = _reference(x, w1, bn1, w_dw, bn2, w2, bn3)
    assert out.shape == (N, C, H, W)
    assert jnp.allclose(out, ref, atol=2e-4, rtol=2e-4), "mismatch vs reference ResBlock"

    print("KERNEL_OK")
</pallas_src>

<mosaic_0001>
module attributes {stable_mosaic.version = 11 : i64} {
  func.func @_resblock_kernel(%arg0: i32, %arg1: memref<1x4x256xf32, #tpu.memory_space<vmem>>, %arg2: memref<4x4xf32, #tpu.memory_space<vmem>>, %arg3: memref<4x1xf32, #tpu.memory_space<vmem>>, %arg4: memref<9x4x1xf32, #tpu.memory_space<vmem>>, %arg5: memref<4x1xf32, #tpu.memory_space<vmem>>, %arg6: memref<4x4xf32, #tpu.memory_space<vmem>>, %arg7: memref<4x1xf32, #tpu.memory_space<vmem>>, %arg8: memref<1x4x256xf32, #tpu.memory_space<vmem>>, %arg9: memref<4x512xf32, #tpu.memory_space<vmem>>) attributes {dimension_semantics = [#tpu.dimension_semantics<parallel>], iteration_bounds = array<i64: 2>, scalar_prefetch = 0 : i64, scratch_operands = 1 : i64, tpu.core_type = #tpu.core_type<tc>, window_params = [{transform_indices = @transform_0, window_bounds = array<i64: 1, 4, 256>}, {pipeline_mode = #tpu.pipeline_mode<synchronous>, transform_indices = @transform_1, window_bounds = array<i64: 4, 4>}, {pipeline_mode = #tpu.pipeline_mode<synchronous>, transform_indices = @transform_2, window_bounds = array<i64: 4, 1>}, {pipeline_mode = #tpu.pipeline_mode<synchronous>, transform_indices = @transform_3, window_bounds = array<i64: 9, 4, 1>}, {pipeline_mode = #tpu.pipeline_mode<synchronous>, transform_indices = @transform_4, window_bounds = array<i64: 4, 1>}, {pipeline_mode = #tpu.pipeline_mode<synchronous>, transform_indices = @transform_5, window_bounds = array<i64: 4, 4>}, {pipeline_mode = #tpu.pipeline_mode<synchronous>, transform_indices = @transform_6, window_bounds = array<i64: 4, 1>}, {transform_indices = @transform_7, window_bounds = array<i64: 1, 4, 256>}]} {
    %c0 = arith.constant 0 : index
    %c0_0 = arith.constant 0 : index
    %c0_1 = arith.constant 0 : index
    %0 = vector.load %arg1[%c0, %c0_0, %c0_1] : memref<1x4x256xf32, #tpu.memory_space<vmem>>, vector<1x4x256xf32>
    %1 = vector.shape_cast %0 : vector<1x4x256xf32> to vector<4x256xf32>
    %c0_2 = arith.constant 0 : index
    %c0_3 = arith.constant 0 : index
    %2 = vector.load %arg2[%c0_2, %c0_3] : memref<4x4xf32, #tpu.memory_space<vmem>>, vector<4x4xf32>
    %cst = arith.constant dense<0.000000e+00> : vector<4x256xf32>
    %3 = tpu.matmul %2, %1, %cst {dimension_numbers = #tpu.dot_dimension_numbers<[1], [0], [0], [1], [0, 0, 1, 1], [], []>} : vector<4x4xf32>, vector<4x256xf32>, vector<4x256xf32> -> vector<4x256xf32>
    %c0_4 = arith.constant 0 : index
    %c0_5 = arith.constant 0 : index
    %4 = vector.load %arg3[%c0_4, %c0_5] : memref<4x1xf32, #tpu.memory_space<vmem>>, vector<4x1xf32>
    %5 = vector.broadcast %4 : vector<4x1xf32> to vector<4x256xf32>
    %6 = arith.addf %3, %5 : vector<4x256xf32>
    %cst_6 = arith.constant 3.000000e+00 : f32
    %7 = vector.broadcast %cst_6 : f32 to vector<4x256xf32>
    %8 = arith.addf %6, %7 : vector<4x256xf32>
    %cst_7 = arith.constant 0.000000e+00 : f32
    %cst_8 = arith.constant 6.000000e+00 : f32
    %9 = vector.broadcast %cst_7 : f32 to vector<4x256xf32>
    %10 = arith.maximumf %9, %8 : vector<4x256xf32>
    %11 = vector.broadcast %cst_8 : f32 to vector<4x256xf32>
    %12 = arith.minimumf %11, %10 : vector<4x256xf32>
    %13 = arith.mulf %6, %12 : vector<4x256xf32>
    %cst_9 = arith.constant 0.166666672 : f32
    %14 = vector.broadcast %cst_9 : f32 to vector<4x256xf32>
    %15 = arith.mulf %13, %14 : vector<4x256xf32>
    %cst_10 = arith.constant 0.000000e+00 : f32
    %16 = vector.broadcast %cst_10 : f32 to vector<4x128xf32>
    %c0_11 = arith.constant 0 : index
    %c0_12 = arith.constant 0 : index
    %17 = vector.load %arg9[%c0_11, %c0_12] : memref<4x512xf32, #tpu.memory_space<vmem>>, vector<4x128xf32>
    tpu.vector_store %arg9[%c0_11, %c0_12], %16 {strides = array<i32>} : memref<4x512xf32, #tpu.memory_space<vmem>>, vector<4x128xf32>,
    %cst_13 = arith.constant 0.000000e+00 : f32
    %18 = vector.broadcast %cst_13 : f32 to vector<4x128xf32>
    %c0_14 = arith.constant 0 : index
    %c384 = arith.constant 384 : index
    %19 = vector.load %arg9[%c0_14, %c384] : memref<4x512xf32, #tpu.memory_space<vmem>>, vector<4x128xf32>
    tpu.vector_store %arg9[%c0_14, %c384], %18 {strides = array<i32>} : memref<4x512xf32, #tpu.memory_space<vmem>>, vector<4x128xf32>,
    %c0_15 = arith.constant 0 : index
    %c128 = arith.constant 128 : index
    %20 = vector.load %arg9[%c0_15, %c128] : memref<4x512xf32, #tpu.memory_space<vmem>>, vector<4x256xf32>
    tpu.vector_store %arg9[%c0_15, %c128], %15 {strides = array<i32>} : memref<4x512xf32, #tpu.memory_space<vmem>>, vector<4x256xf32>,
    %21 = tpu.iota {dimensions = array<i32: 1>} : vector<1x256xi32>
    %c16_i32 = arith.constant 16 : i32
    %c0_i32 = arith.constant 0 : i32
    %22 = arith.cmpi eq, %c16_i32, %c0_i32 : i32
    %c1_i32 = arith.constant 1 : i32
    %23 = arith.select %22, %c1_i32, %c16_i32 : i32
    %24 = vector.broadcast %23 : i32 to vector<1x256xi32>
    %25 = arith.remsi %21, %24 : vector<1x256xi32>
    %c0_i32_16 = arith.constant 0 : i32
    %26 = vector.broadcast %c0_i32_16 : i32 to vector<1x256xi32>
    %27 = arith.cmpi ne, %25, %26 : vector<1x256xi32>
    %c0_i32_17 = arith.constant 0 : i32
    %28 = vector.broadcast %c0_i32_17 : i32 to vector<1x256xi32>
    %29 = arith.cmpi slt, %25, %28 : vector<1x256xi32>
    %c0_i32_18 = arith.constant 0 : i32
    %30 = arith.cmpi slt, %23, %c0_i32_18 : i32
    %31 = vector.broadcast %30 : i1 to vector<1x256xi1>
    %32 = vector.broadcast %31 : vector<1x256xi1> to vector<1x256xi1>
    %33 = arith.xori %29, %32 : vector<1x256xi1>
    %34 = arith.andi %33, %27 : vector<1x256xi1>
    %35 = vector.broadcast %23 : i32 to vector<1x256xi32>
    %36 = arith.addi %25, %35 : vector<1x256xi32>
    %37 = arith.select %34, %36, %25 : vector<1x256xi1>, vector<1x256xi32>
    %cst_19 = arith.constant 0.000000e+00 : f32
    %38 = vector.broadcast %cst_19 : f32 to vector<4x256xf32>
    %c0_20 = arith.constant 0 : index
    %c111 = arith.constant 111 : index
    %39 = vector.load %arg9[%c0_20, %c111] : memref<4x512xf32, #tpu.memory_space<vmem>>, vector<4x256xf32>
    %c-1_i32 = arith.constant -1 : i32
    %40 = vector.broadcast %c-1_i32 : i32 to vector<1x256xi32>
    %41 = arith.addi %37, %40 : vector<1x256xi32>
    %c0_i32_21 = arith.constant 0 : i32
    %42 = vector.broadcast %c0_i32_21 : i32 to vector<1x256xi32>
    %43 = arith.cmpi sge, %41, %42 : vector<1x256xi32>
    %c-1_i32_22 = arith.constant -1 : i32
    %44 = vector.broadcast %c-1_i32_22 : i32 to vector<1x256xi32>
    %45 = arith.addi %37, %44 : vector<1x256xi32>
    %c16_i32_23 = arith.constant 16 : i32
    %46 = vector.broadcast %c16_i32_23 : i32 to vector<1x256xi32>
    %47 = arith.cmpi slt, %45, %46 : vector<1x256xi32>
    %48 = arith.andi %43, %47 : vector<1x256xi1>
    %cst_24 = arith.constant 0.000000e+00 : f32
    %49 = vector.shape_cast %48 : vector<1x256xi1> to vector<1x256xi1>
    %50 = vector.broadcast %49 : vector<1x256xi1> to vector<4x256xi1>
    %51 = vector.broadcast %cst_24 : f32 to vector<4x256xf32>
    %52 = arith.select %50, %39, %51 : vector<4x256xi1>, vector<4x256xf32>
    %c0_25 = arith.constant 0 : index
    %c0_26 = arith.constant 0 : index
    %c0_27 = arith.constant 0 : index
    %53 = vector.load %arg4[%c0_25, %c0_26, %c0_27] : memref<9x4x1xf32, #tpu.memory_space<vmem>>, vector<1x4x1xf32>
    %54 = vector.shape_cast %53 : vector<1x4x1xf32> to vector<4x1xf32>
    %55 = vector.broadcast %54 : vector<4x1xf32> to vector<4x256xf32>
    %56 = arith.mulf %52, %55 : vector<4x256xf32>
    %57 = arith.addf %38, %56 : vector<4x256xf32>
    %c0_28 = arith.constant 0 : index
    %c112 = arith.constant 112 : index
    %58 = vector.load %arg9[%c0_28, %c112] : memref<4x512xf32, #tpu.memory_space<vmem>>, vector<4x256xf32>
    %c1 = arith.constant 1 : index
    %c0_29 = arith.constant 0 : index
    %c0_30 = arith.constant 0 : index
    %59 = vector.load %arg4[%c1, %c0_29, %c0_30] : memref<9x4x1xf32, #tpu.memory_space<vmem>>, vector<1x4x1xf32>
    %60 = vector.shape_cast %59 : vector<1x4x1xf32> to vector<4x1xf32>
    %61 = vector.broadcast %60 : vector<4x1xf32> to vector<4x256xf32>
    %62 = arith.mulf %58, %61 : vector<4x256xf32>
    %63 = arith.addf %57, %62 : vector<4x256xf32>
    %c0_31 = arith.constant 0 : index
    %c113 = arith.constant 113 : index
    %64 = vector.load %arg9[%c0_31, %c113] : memref<4x512xf32, #tpu.memory_space<vmem>>, vector<4x256xf32>
    %c1_i32_32 = arith.constant 1 : i32
    %65 = vector.broadcast %c1_i32_32 : i32 to vector<1x256xi32>
    %66 = arith.addi %37, %65 : vector<1x256xi32>
    %c0_i32_33 = arith.constant 0 : i32
    %67 = vector.broadcast %c0_i32_33 : i32 to vector<1x256xi32>
    %68 = arith.cmpi sge, %66, %67 : vector<1x256xi32>
    %c1_i32_34 = arith.constant 1 : i32
    %69 = vector.broadcast %c1_i32_34 : i32 to vector<1x256xi32>
    %70 = arith.addi %37, %69 : vector<1x256xi32>
    %c16_i32_35 = arith.constant 16 : i32
    %71 = vector.broadcast %c16_i32_35 : i32 to vector<1x256xi32>
    %72 = arith.cmpi slt, %70, %71 : vector<1x256xi32>
    %73 = arith.andi %68, %72 : vector<1x256xi1>
    %cst_36 = arith.constant 0.000000e+00 : f32
    %74 = vector.shape_cast %73 : vector<1x256xi1> to vector<1x256xi1>
    %75 = vector.broadcast %74 : vector<1x256xi1> to vector<4x256xi1>
    %76 = vector.broadcast %cst_36 : f32 to vector<4x256xf32>
    %77 = arith.select %75, %64, %76 : vector<4x256xi1>, vector<4x256xf32>
    %c2 = arith.constant 2 : index
    %c0_37 = arith.constant 0 : index
    %c0_38 = arith.constant 0 : index
    %78 = vector.load %arg4[%c2, %c0_37, %c0_38] : memref<9x4x1xf32, #tpu.memory_space<vmem>>, vector<1x4x1xf32>
    %79 = vector.shape_cast %78 : vector<1x4x1xf32> to vector<4x1xf32>
    %80 = vector.broadcast %79 : vector<4x1xf32> to vector<4x256xf32>
    %81 = arith.mulf %77, %80 : vector<4x256xf32>
    %82 = arith.addf %63, %81 : vector<4x256xf32>
    %c0_39 = arith.constant 0 : index
    %c127 = arith.constant 127 : index
    %83 = vector.load %arg9[%c0_39, %c127] : memref<4x512xf32, #tpu.memory_space<vmem>>, vector<4x256xf32>
    %c-1_i32_40 = arith.constant -1 : i32
    %84 = vector.broadcast %c-1_i32_40 : i32 to vector<1x256xi32>
    %85 = arith.addi %37, %84 : vector<1x256xi32>
    %c0_i32_41 = arith.constant 0 : i32
    %86 = vector.broadcast %c0_i32_41 : i32 to vector<1x256xi32>
    %87 = arith.cmpi sge, %85, %86 : vector<1x256xi32>
    %c-1_i32_42 = arith.constant -1 : i32
    %88 = vector.broadcast %c-1_i32_42 : i32 to vector<1x256xi32>
    %89 = arith.addi %37, %88 : vector<1x256xi32>
    %c16_i32_43 = arith.constant 16 : i32
    %90 = vector.broadcast %c16_i32_43 : i32 to vector<1x256xi32>
    %91 = arith.cmpi slt, %89, %90 : vector<1x256xi32>
    %92 = arith.andi %87, %91 : vector<1x256xi1>
    %cst_44 = arith.constant 0.000000e+00 : f32
    %93 = vector.shape_cast %92 : vector<1x256xi1> to vector<1x256xi1>
    %94 = vector.broadcast %93 : vector<1x256xi1> to vector<4x256xi1>
    %95 = vector.broadcast %cst_44 : f32 to vector<4x256xf32>
    %96 = arith.select %94, %83, %95 : vector<4x256xi1>, vector<4x256xf32>
    %c3 = arith.constant 3 : index
    %c0_45 = arith.constant 0 : index
    %c0_46 = arith.constant 0 : index
    %97 = vector.load %arg4[%c3, %c0_45, %c0_46] : memref<9x4x1xf32, #tpu.memory_space<vmem>>, vector<1x4x1xf32>
    %98 = vector.shape_cast %97 : vector<1x4x1xf32> to vector<4x1xf32>
    %99 = vector.broadcast %98 : vector<4x1xf32> to vector<4x256xf32>
    %100 = arith.mulf %96, %99 : vector<4x256xf32>
    %101 = arith.addf %82, %100 : vector<4x256xf32>
    %c0_47 = arith.constant 0 : index
    %c128_48 = arith.constant 128 : index
    %102 = vector.load %arg9[%c0_47, %c128_48] : memref<4x512xf32, #tpu.memory_space<vmem>>, vector<4x256xf32>
    %c4 = arith.constant 4 : index
    %c0_49 = arith.constant 0 : index
    %c0_50 = arith.constant 0 : index
    %103 = vector.load %arg4[%c4, %c0_49, %c0_50] : memref<9x4x1xf32, #tpu.memory_space<vmem>>, vector<1x4x1xf32>
    %104 = vector.shape_cast %103 : vector<1x4x1xf32> to vector<4x1xf32>
    %105 = vector.broadcast %104 : vector<4x1xf32> to vector<4x256xf32>
    %106 = arith.mulf %102, %105 : vector<4x256xf32>
    %107 = arith.addf %101, %106 : vector<4x256xf32>
    %c0_51 = arith.constant 0 : index
    %c129 = arith.constant 129 : index
    %108 = vector.load %arg9[%c0_51, %c129] : memref<4x512xf32, #tpu.memory_space<vmem>>, vector<4x256xf32>
    %c1_i32_52 = arith.constant 1 : i32
    %109 = vector.broadcast %c1_i32_52 : i32 to vector<1x256xi32>
    %110 = arith.addi %37, %109 : vector<1x256xi32>
    %c0_i32_53 = arith.constant 0 : i32
    %111 = vector.broadcast %c0_i32_53 : i32 to vector<1x256xi32>
    %112 = arith.cmpi sge, %110, %111 : vector<1x256xi32>
    %c1_i32_54 = arith.constant 1 : i32
    %113 = vector.broadcast %c1_i32_54 : i32 to vector<1x256xi32>
    %114 = arith.addi %37, %113 : vector<1x256xi32>
    %c16_i32_55 = arith.constant 16 : i32
    %115 = vector.broadcast %c16_i32_55 : i32 to vector<1x256xi32>
    %116 = arith.cmpi slt, %114, %115 : vector<1x256xi32>
    %117 = arith.andi %112, %116 : vector<1x256xi1>
    %cst_56 = arith.constant 0.000000e+00 : f32
    %118 = vector.shape_cast %117 : vector<1x256xi1> to vector<1x256xi1>
    %119 = vector.broadcast %118 : vector<1x256xi1> to vector<4x256xi1>
    %120 = vector.broadcast %cst_56 : f32 to vector<4x256xf32>
    %121 = arith.select %119, %108, %120 : vector<4x256xi1>, vector<4x256xf32>
    %c5 = arith.constant 5 : index
    %c0_57 = arith.constant 0 : index
    %c0_58 = arith.constant 0 : index
    %122 = vector.load %arg4[%c5, %c0_57, %c0_58] : memref<9x4x1xf32, #tpu.memory_space<vmem>>, vector<1x4x1xf32>
    %123 = vector.shape_cast %122 : vector<1x4x1xf32> to vector<4x1xf32>
    %124 = vector.broadcast %123 : vector<4x1xf32> to vector<4x256xf32>
    %125 = arith.mulf %121, %124 : vector<4x256xf32>
    %126 = arith.addf %107, %125 : vector<4x256xf32>
    %c0_59 = arith.constant 0 : index
    %c143 = arith.constant 143 : index
    %127 = vector.load %arg9[%c0_59, %c143] : memref<4x512xf32, #tpu.memory_space<vmem>>, vector<4x256xf32>
    %c-1_i32_60 = arith.constant -1 : i32
    %128 = vector.broadcast %c-1_i32_60 : i32 to vector<1x256xi32>
    %129 = arith.addi %37, %128 : vector<1x256xi32>
    %c0_i32_61 = arith.constant 0 : i32
    %130 = vector.broadcast %c0_i32_61 : i32 to vector<1x256xi32>
    %131 = arith.cmpi sge, %129, %130 : vector<1x256xi32>
    %c-1_i32_62 = arith.constant -1 : i32
    %132 = vector.broadcast %c-1_i32_62 : i32 to vector<1x256xi32>
    %133 = arith.addi %37, %132 : vector<1x256xi32>
    %c16_i32_63 = arith.constant 16 : i32
    %134 = vector.broadcast %c16_i32_63 : i32 to vector<1x256xi32>
    %135 = arith.cmpi slt, %133, %134 : vector<1x256xi32>
    %136 = arith.andi %131, %135 : vector<1x256xi1>
    %cst_64 = arith.constant 0.000000e+00 : f32
    %137 = vector.shape_cast %136 : vector<1x256xi1> to vector<1x256xi1>
    %138 = vector.broadcast %137 : vector<1x256xi1> to vector<4x256xi1>
    %139 = vector.broadcast %cst_64 : f32 to vector<4x256xf32>
    %140 = arith.select %138, %127, %139 : vector<4x256xi1>, vector<4x256xf32>
    %c6 = arith.constant 6 : index
    %c0_65 = arith.constant 0 : index
    %c0_66 = arith.constant 0 : index
    %141 = vector.load %arg4[%c6, %c0_65, %c0_66] : memref<9x4x1xf32, #tpu.memory_space<vmem>>, vector<1x4x1xf32>
    %142 = vector.shape_cast %141 : vector<1x4x1xf32> to vector<4x1xf32>
    %143 = vector.broadcast %142 : vector<4x1xf32> to vector<4x256xf32>
    %144 = arith.mulf %140, %143 : vector<4x256xf32>
    %145 = arith.addf %126, %144 : vector<4x256xf32>
    %c0_67 = arith.constant 0 : index
    %c144 = arith.constant 144 : index
    %146 = vector.load %arg9[%c0_67, %c144] : memref<4x512xf32, #tpu.memory_space<vmem>>, vector<4x256xf32>
    %c7 = arith.constant 7 : index
    %c0_68 = arith.constant 0 : index
    %c0_69 = arith.constant 0 : index
    %147 = vector.load %arg4[%c7, %c0_68, %c0_69] : memref<9x4x1xf32, #tpu.memory_space<vmem>>, vector<1x4x1xf32>
    %148 = vector.shape_cast %147 : vector<1x4x1xf32> to vector<4x1xf32>
    %149 = vector.broadcast %148 : vector<4x1xf32> to vector<4x256xf32>
    %150 = arith.mulf %146, %149 : vector<4x256xf32>
    %151 = arith.addf %145, %150 : vector<4x256xf32>
    %c0_70 = arith.constant 0 : index
    %c145 = arith.constant 145 : index
    %152 = vector.load %arg9[%c0_70, %c145] : memref<4x512xf32, #tpu.memory_space<vmem>>, vector<4x256xf32>
    %c1_i32_71 = arith.constant 1 : i32
    %153 = vector.broadcast %c1_i32_71 : i32 to vector<1x256xi32>
    %154 = arith.addi %37, %153 : vector<1x256xi32>
    %c0_i32_72 = arith.constant 0 : i32
    %155 = vector.broadcast %c0_i32_72 : i32 to vector<1x256xi32>
    %156 = arith.cmpi sge, %154, %155 : vector<1x256xi32>
    %c1_i32_73 = arith.constant 1 : i32
    %157 = vector.broadcast %c1_i32_73 : i32 to vector<1x256xi32>
    %158 = arith.addi %37, %157 : vector<1x256xi32>
    %c16_i32_74 = arith.constant 16 : i32
    %159 = vector.broadcast %c16_i32_74 : i32 to vector<1x256xi32>
    %160 = arith.cmpi slt, %158, %159 : vector<1x256xi32>
    %161 = arith.andi %156, %160 : vector<1x256xi1>
    %cst_75 = arith.constant 0.000000e+00 : f32
    %162 = vector.shape_cast %161 : vector<1x256xi1> to vector<1x256xi1>
    %163 = vector.broadcast %162 : vector<1x256xi1> to vector<4x256xi1>
    %164 = vector.broadcast %cst_75 : f32 to vector<4x256xf32>
    %165 = arith.select %163, %152, %164 : vector<4x256xi1>, vector<4x256xf32>
    %c8 = arith.constant 8 : index
    %c0_76 = arith.constant 0 : index
    %c0_77 = arith.constant 0 : index
    %166 = vector.load %arg4[%c8, %c0_76, %c0_77] : memref<9x4x1xf32, #tpu.memory_space<vmem>>, vector<1x4x1xf32>
    %167 = vector.shape_cast %166 : vector<1x4x1xf32> to vector<4x1xf32>
    %168 = vector.broadcast %167 : vector<4x1xf32> to vector<4x256xf32>
    %169 = arith.mulf %165, %168 : vector<4x256xf32>
    %170 = arith.addf %151, %169 : vector<4x256xf32>
    %c0_78 = arith.constant 0 : index
    %c0_79 = arith.constant 0 : index
    %171 = vector.load %arg5[%c0_78, %c0_79] : memref<4x1xf32, #tpu.memory_space<vmem>>, vector<4x1xf32>
    %172 = vector.broadcast %171 : vector<4x1xf32> to vector<4x256xf32>
    %173 = arith.addf %170, %172 : vector<4x256xf32>
    %cst_80 = arith.constant 3.000000e+00 : f32
    %174 = vector.broadcast %cst_80 : f32 to vector<4x256xf32>
    %175 = arith.addf %173, %174 : vector<4x256xf32>
    %cst_81 = arith.constant 0.000000e+00 : f32
    %cst_82 = arith.constant 6.000000e+00 : f32
    %176 = vector.broadcast %cst_81 : f32 to vector<4x256xf32>
    %177 = arith.maximumf %176, %175 : vector<4x256xf32>
    %178 = vector.broadcast %cst_82 : f32 to vector<4x256xf32>
    %179 = arith.minimumf %178, %177 : vector<4x256xf32>
    %180 = arith.mulf %173, %179 : vector<4x256xf32>
    %cst_83 = arith.constant 0.166666672 : f32
    %181 = vector.broadcast %cst_83 : f32 to vector<4x256xf32>
    %182 = arith.mulf %180, %181 : vector<4x256xf32>
    %c0_84 = arith.constant 0 : index
    %c0_85 = arith.constant 0 : index
    %183 = vector.load %arg6[%c0_84, %c0_85] : memref<4x4xf32, #tpu.memory_space<vmem>>, vector<4x4xf32>
    %cst_86 = arith.constant dense<0.000000e+00> : vector<4x256xf32>
    %184 = tpu.matmul %183, %182, %cst_86 {dimension_numbers = #tpu.dot_dimension_numbers<[1], [0], [0], [1], [0, 0, 1, 1], [], []>} : vector<4x4xf32>, vector<4x256xf32>, vector<4x256xf32> -> vector<4x256xf32>
    %c0_87 = arith.constant 0 : index
    %c0_88 = arith.constant 0 : index
    %185 = vector.load %arg7[%c0_87, %c0_88] : memref<4x1xf32, #tpu.memory_space<vmem>>, vector<4x1xf32>
    %186 = vector.broadcast %185 : vector<4x1xf32> to vector<4x256xf32>
    %187 = arith.addf %184, %186 : vector<4x256xf32>
    %188 = arith.addf %1, %187 : vector<4x256xf32>
    %189 = vector.shape_cast %188 : vector<4x256xf32> to vector<1x4x256xf32>
    %c0_89 = arith.constant 0 : index
    %c0_90 = arith.constant 0 : index
    %c0_91 = arith.constant 0 : index
    %190 = vector.load %arg8[%c0_89, %c0_90, %c0_91] : memref<1x4x256xf32, #tpu.memory_space<vmem>>, vector<1x4x256xf32>
    tpu.vector_store %arg8[%c0_89, %c0_90, %c0_91], %189 {strides = array<i32>} : memref<1x4x256xf32, #tpu.memory_space<vmem>>, vector<1x4x256xf32>,
    return
  }
  func.func @transform_0(%arg0: i32) -> (i32, i32, i32) {
    %c0_i32 = arith.constant 0 : i32
    %c0_i32_0 = arith.constant 0 : i32
    %c0_i32_1 = arith.constant 0 : i32
    return %arg0, %c0_i32, %c0_i32_0 : i32, i32, i32
  }
  func.func @transform_1(%arg0: i32) -> (i32, i32) {
    %c0_i32 = arith.constant 0 : i32
    %c0_i32_0 = arith.constant 0 : i32
    %c0_i32_1 = arith.constant 0 : i32
    return %c0_i32, %c0_i32_0 : i32, i32
  }
  func.func @transform_2(%arg0: i32) -> (i32, i32) {
    %c0_i32 = arith.constant 0 : i32
    %c0_i32_0 = arith.constant 0 : i32
    %c0_i32_1 = arith.constant 0 : i32
    return %c0_i32, %c0_i32_0 : i32, i32
  }
  func.func @transform_3(%arg0: i32) -> (i32, i32, i32) {
    %c0_i32 = arith.constant 0 : i32
    %c0_i32_0 = arith.constant 0 : i32
    %c0_i32_1 = arith.constant 0 : i32
    %c0_i32_2 = arith.constant 0 : i32
    return %c0_i32, %c0_i32_0, %c0_i32_1 : i32, i32, i32
  }
  func.func @transform_4(%arg0: i32) -> (i32, i32) {
    %c0_i32 = arith.constant 0 : i32
    %c0_i32_0 = arith.constant 0 : i32
    %c0_i32_1 = arith.constant 0 : i32
    return %c0_i32, %c0_i32_0 : i32, i32
  }
  func.func @transform_5(%arg0: i32) -> (i32, i32) {
    %c0_i32 = arith.constant 0 : i32
    %c0_i32_0 = arith.constant 0 : i32
    %c0_i32_1 = arith.constant 0 : i32
    return %c0_i32, %c0_i32_0 : i32, i32
  }
  func.func @transform_6(%arg0: i32) -> (i32, i32) {
    %c0_i32 = arith.constant 0 : i32
    %c0_i32_0 = arith.constant 0 : i32
    %c0_i32_1 = arith.constant 0 : i32
    return %c0_i32, %c0_i32_0 : i32, i32
  }
  func.func @transform_7(%arg0: i32) -> (i32, i32, i32) {
    %c0_i32 = arith.constant 0 : i32
    %c0_i32_0 = arith.constant 0 : i32
    %c0_i32_1 = arith.constant 0 : i32
    return %arg0, %c0_i32, %c0_i32_0 : i32, i32, i32
  }
}

</mosaic_0001>

<llo_original>
// kernel: res_block.1
$region0: #{res_block.1}
  #allocation0 [shape = 'u32[]', space=smem, size = 0x4, offset = 0x4, fixed_abs, tag = 'smem constant byte address 0x4 - core index']
  #allocation1 [shape = 'u32[144,128]{1,0:T(1,128)}', space=vmem, size = 0x12000, scoped, tag = 'internal scratch']
  #allocation2 [shape = 'f32[4,512]{1,0:T(4,128)}', space=vmem, size = 0x2000, scoped, tag = 'scratch operand']
  %s0 = inlined_call_operand.vmem [shape: f32[2,4,256], index: 0, kind: input, shape index: {}]
  %s1 = inlined_call_operand.vmem [shape: f32[4,4], index: 1, kind: input, shape index: {}]
  %s2 = inlined_call_operand.vmem [shape: f32[4,1], index: 2, kind: input, shape index: {}]
  %s3 = inlined_call_operand.vmem [shape: f32[9,4,1], index: 3, kind: input, shape index: {}]
  %s4 = inlined_call_operand.vmem [shape: f32[4,1], index: 4, kind: input, shape index: {}]
  %s5 = inlined_call_operand.vmem [shape: f32[4,4], index: 5, kind: input, shape index: {}]
  %s6 = inlined_call_operand.vmem [shape: f32[4,1], index: 6, kind: input, shape index: {}]
  %s7 = inlined_call_operand.vmem [shape: f32[2,4,256], index: 7, kind: output, shape index: {}]
  %s8 = sld [smem:[#allocation0]]
  $region61: #{res_block.1} parent=0
    _
  %s10 = ssub.s32 1, %s8
  %s11 = scalar_select 0, %s10, %s8
  loop: start=0, step=1, limit=4
  $region2: #{res_block.1} parent=0 // loop_pre_header
    _
  $region3: #{res_block.1} parent=0 // loop_header
    %s13 = sphi 0, %s17
    %p14 = scmp.ge.s32.totalorder %s13, 4
    %s23 = sphi 0, %s25
    %s26 = sphi 0, %s23
    %s27 = sphi 0, %s26
    %s43 = sphi 0, %s27
    %s47 = sphi 0, %s47
    %s49 = sphi 0, %s47
    %s50 = sphi 0, %s49
    %s64 = sphi 0, %s50
    %s68 = sphi 0, %s68
    %s70 = sphi 0, %s68
    %s71 = sphi 0, %s70
    %s85 = sphi 0, %s71
    %s89 = sphi 0, %s89
    %s91 = sphi 0, %s89
    %s92 = sphi 0, %s91
    %s106 = sphi 0, %s92
    %s110 = sphi 0, %s110
    %s112 = sphi 0, %s110
    %s113 = sphi 0, %s112
    %s127 = sphi 0, %s113
    %s131 = sphi 0, %s131
    %s133 = sphi 0, %s131
    %s134 = sphi 0, %s133
    %s148 = sphi 0, %s134
    %s152 = sphi 0, %s152
    %s154 = sphi 0, %s152
    %s155 = sphi 0, %s154
    %s169 = sphi 0, %s155
    %s175 = sphi 0, %s177
    %s178 = sphi 0, %s175
    %s179 = sphi 0, %s178
    %s195 = sphi 0, %s179
  $region4: #{res_block.1} parent=0 // loop_header_branch
    %16 = sbr.rel (%p14) target = $region8
  $region5: #{res_block.1} parent=0 // loop_body
    %s18 = ssub.s32 %s13, 1
    %s19 = ssub.s32 %s13, 2
    %s20 = sadd.s32 %s13, 1
    %s21 = ssub.s32 %s13, %s20
    %p22 = scmp.eq.s32.totalorder %s21, 0
    %s24 = sadd.s32 %s23, 1
    %s25 = scalar_select %p22, %s23, %s24
    %p28 = pneg %p22
    %p29 = scmp.eq.s32.totalorder %s13, 1
    %p30 = por %p28, %p29
    %p31 = scmp.ne.s32.totalorder %s23, %s26
    %p32 = scmp.eq.s32.totalorder %s13, 0
    %p33 = por %p31, %p32
    %p34 = scmp.ne.s32.totalorder %s23, %s26
    %p35 = scmp.eq.s32.totalorder %s18, 1
    %p36 = por %p34, %p35
    %p37 = scmp.ne.s32.totalorder %s26, %s27
    %p38 = scmp.eq.s32.totalorder %s18, 0
    %p39 = por %p37, %p38
    %p40 = scmp.ne.s32.totalorder %s26, %s27
    %p41 = scmp.eq.s32.totalorder %s19, 1
    %p42 = por %p40, %p41
    %p44 = scmp.ne.s32.totalorder %s27, %s43
    %p45 = scmp.eq.s32.totalorder %s19, 0
    %p46 = por %p44, %p45
    %s48 = sadd.s32 %s47, 1
    %p51 = scmp.eq.s32.totalorder %s13, 1
    %p52 = scmp.ne.s32.totalorder %s47, %s49
    %p53 = scmp.eq.s32.totalorder %s13, 0
    %p54 = por %p52, %p53
    %p55 = scmp.ne.s32.totalorder %s47, %s49
    %p56 = scmp.eq.s32.totalorder %s18, 1
    %p57 = por %p55, %p56
    %p58 = scmp.ne.s32.totalorder %s49, %s50
    %p59 = scmp.eq.s32.totalorder %s18, 0
    %p60 = por %p58, %p59
    %p61 = scmp.ne.s32.totalorder %s49, %s50
    %p62 = scmp.eq.s32.totalorder %s19, 1
    %p63 = por %p61, %p62
    %p65 = scmp.ne.s32.totalorder %s50, %s64
    %p66 = scmp.eq.s32.totalorder %s19, 0
    %p67 = por %p65, %p66
    %s69 = sadd.s32 %s68, 1
    %p72 = scmp.eq.s32.totalorder %s13, 1
    %p73 = scmp.ne.s32.totalorder %s68, %s70
    %p74 = scmp.eq.s32.totalorder %s13, 0
    %p75 = por %p73, %p74
    %p76 = scmp.ne.s32.totalorder %s68, %s70
    %p77 = scmp.eq.s32.totalorder %s18, 1
    %p78 = por %p76, %p77
    %p79 = scmp.ne.s32.totalorder %s70, %s71
    %p80 = scmp.eq.s32.totalorder %s18, 0
    %p81 = por %p79, %p80
    %p82 = scmp.ne.s32.totalorder %s70, %s71
    %p83 = scmp.eq.s32.totalorder %s19, 1
    %p84 = por %p82, %p83
    %p86 = scmp.ne.s32.totalorder %s71, %s85
    %p87 = scmp.eq.s32.totalorder %s19, 0
    %p88 = por %p86, %p87
    %s90 = sadd.s32 %s89, 1
    %p93 = scmp.eq.s32.totalorder %s13, 1
    %p94 = scmp.ne.s32.totalorder %s89, %s91
    %p95 = scmp.eq.s32.totalorder %s13, 0
    %p96 = por %p94, %p95
    %p97 = scmp.ne.s32.totalorder %s89, %s91
    %p98 = scmp.eq.s32.totalorder %s18, 1
    %p99 = por %p97, %p98
    %p100 = scmp.ne.s32.totalorder %s91, %s92
    %p101 = scmp.eq.s32.totalorder %s18, 0
    %p102 = por %p100, %p101
    %p103 = scmp.ne.s32.totalorder %s91, %s92
    %p104 = scmp.eq.s32.totalorder %s19, 1
    %p105 = por %p103, %p104
    %p107 = scmp.ne.s32.totalorder %s92, %s106
    %p108 = scmp.eq.s32.totalorder %s19, 0
    %p109 = por %p107, %p108
    %s111 = sadd.s32 %s110, 1
    %p114 = scmp.eq.s32.totalorder %s13, 1
    %p115 = scmp.ne.s32.totalorder %s110, %s112
    %p116 = scmp.eq.s32.totalorder %s13, 0
    %p117 = por %p115, %p116
    %p118 = scmp.ne.s32.totalorder %s110, %s112
    %p119 = scmp.eq.s32.totalorder %s18, 1
    %p120 = por %p118, %p119
    %p121 = scmp.ne.s32.totalorder %s112, %s113
    %p122 = scmp.eq.s32.totalorder %s18, 0
    %p123 = por %p121, %p122
    %p124 = scmp.ne.s32.totalorder %s112, %s113
    %p125 = scmp.eq.s32.totalorder %s19, 1
    %p126 = por %p124, %p125
    %p128 = scmp.ne.s32.totalorder %s113, %s127
    %p129 = scmp.eq.s32.totalorder %s19, 0
    %p130 = por %p128, %p129
    %s132 = sadd.s32 %s131, 1
    %p135 = scmp.eq.s32.totalorder %s13, 1
    %p136 = scmp.ne.s32.totalorder %s131, %s133
    %p137 = scmp.eq.s32.totalorder %s13, 0
    %p138 = por %p136, %p137
    %p139 = scmp.ne.s32.totalorder %s131, %s133
    %p140 = scmp.eq.s32.totalorder %s18, 1
    %p141 = por %p139, %p140
    %p142 = scmp.ne.s32.totalorder %s133, %s134
    %p143 = scmp.eq.s32.totalorder %s18, 0
    %p144 = por %p142, %p143
    %p145 = scmp.ne.s32.totalorder %s133, %s134
    %p146 = scmp.eq.s32.totalorder %s19, 1
    %p147 = por %p145, %p146
    %p149 = scmp.ne.s32.totalorder %s134, %s148
    %p150 = scmp.eq.s32.totalorder %s19, 0
    %p151 = por %p149, %p150
    %s153 = sadd.s32 %s152, 1
    %p156 = scmp.eq.s32.totalorder %s13, 1
    %p157 = scmp.ne.s32.totalorder %s152, %s154
    %p158 = scmp.eq.s32.totalorder %s13, 0
    %p159 = por %p157, %p158
    %p160 = scmp.ne.s32.totalorder %s152, %s154
    %p161 = scmp.eq.s32.totalorder %s18, 1
    %p162 = por %p160, %p161
    %p163 = scmp.ne.s32.totalorder %s154, %s155
    %p164 = scmp.eq.s32.totalorder %s18, 0
    %p165 = por %p163, %p164
    %p166 = scmp.ne.s32.totalorder %s154, %s155
    %p167 = scmp.eq.s32.totalorder %s19, 1
    %p168 = por %p166, %p167
    %p170 = scmp.ne.s32.totalorder %s155, %s169
    %p171 = scmp.eq.s32.totalorder %s19, 0
    %p172 = por %p170, %p171
    %s173 = ssub.s32 %s13, %s20
    %p174 = scmp.eq.s32.totalorder %s173, 0
    %s176 = sadd.s32 %s175, 1
    %s177 = scalar_select %p174, %s175, %s176
    %p180 = pneg %p174
    %p181 = scmp.eq.s32.totalorder %s13, 1
    %p182 = por %p180, %p181
    %p183 = scmp.ne.s32.totalorder %s175, %s178
    %p184 = scmp.eq.s32.totalorder %s13, 0
    %p185 = por %p183, %p184
    %p186 = scmp.ne.s32.totalorder %s175, %s178
    %p187 = scmp.eq.s32.totalorder %s18, 1
    %p188 = por %p186, %p187
    %p189 = scmp.ne.s32.totalorder %s178, %s179
    %p190 = scmp.eq.s32.totalorder %s18, 0
    %p191 = por %p189, %p190
    %p192 = scmp.ne.s32.totalorder %s178, %s179
    %p193 = scmp.eq.s32.totalorder %s19, 1
    %p194 = por %p192, %p193
    %p196 = scmp.ne.s32.totalorder %s179, %s195
    %p197 = scmp.eq.s32.totalorder %s19, 0
    %p198 = por %p196, %p197
    %p199 = scmp.le.s32.totalorder 1, %s13
    %p200 = scmp.lt.s32.totalorder %s13, 3
    %p201 = pnand %p199, %p200
    %p202 = pneg %p201
    // Predicated region
    $region9: #{res_block.1} parent=5 // pred_check
      _
    $region10: #{res_block.1} parent=5 // pred_check_branch
      %204 = sbr.rel (%p201) target = $region12
    $region11: #{res_block.1} parent=5 // pred_region
      %s205 = ssub.s32 %s13, 1
      // Predicated region
      $region13: #{res_block.1} parent=11 // pred_check
        %p206 = pneg %p60
      $region14: #{res_block.1} parent=11 // pred_check_branch
        %208 = sbr.rel (%p206) target = $region16
      $region15: #{res_block.1} parent=11 // pred_region
        _
      $region16: #{res_block.1} parent=11 // pred_fallthru
        _
      // Predicated region
      $region17: #{res_block.1} parent=11 // pred_check
        %p209 = pneg %p81
      $region18: #{res_block.1} parent=11 // pred_check_branch
        %211 = sbr.rel (%p209) target = $region20
      $region19: #{res_block.1} parent=11 // pred_region
        _
      $region20: #{res_block.1} parent=11 // pred_fallthru
        _
      // Predicated region
      $region21: #{res_block.1} parent=11 // pred_check
        %p212 = pneg %p102
      $region22: #{res_block.1} parent=11 // pred_check_branch
        %214 = sbr.rel (%p212) target = $region24
      $region23: #{res_block.1} parent=11 // pred_region
        _
      $region24: #{res_block.1} parent=11 // pred_fallthru
        _
      // Predicated region
      $region25: #{res_block.1} parent=11 // pred_check
        %p215 = pneg %p123
      $region26: #{res_block.1} parent=11 // pred_check_branch
        %217 = sbr.rel (%p215) target = $region28
      $region27: #{res_block.1} parent=11 // pred_region
        _
      $region28: #{res_block.1} parent=11 // pred_fallthru
        _
      // Predicated region
      $region29: #{res_block.1} parent=11 // pred_check
        %p218 = pneg %p144
      $region30: #{res_block.1} parent=11 // pred_check_branch
        %220 = sbr.rel (%p218) target = $region32
      $region31: #{res_block.1} parent=11 // pred_region
        _
      $region32: #{res_block.1} parent=11 // pred_fallthru
        _
      // Predicated region
      $region33: #{res_block.1} parent=11 // pred_check
        %p221 = pneg %p165
      $region34: #{res_block.1} parent=11 // pred_check_branch
        %223 = sbr.rel (%p221) target = $region36
      $region35: #{res_block.1} parent=11 // pred_region
        _
      $region36: #{res_block.1} parent=11 // pred_fallthru
        _
    $region12: #{res_block.1} parent=5 // pred_fallthru
      _
    %p224 = scmp.lt.s32.totalorder %s13, 2
    // Predicated region
    $region37: #{res_block.1} parent=5 // pred_check
      %p225 = pneg %p224
    $region38: #{res_block.1} parent=5 // pred_check_branch
      %227 = sbr.rel (%p225) target = $region40
    $region39: #{res_block.1} parent=5 // pred_region
      // Predicated region
      $region41: #{res_block.1} parent=39 // pred_check
        %p228 = pneg %p33
      $region42: #{res_block.1} parent=39 // pred_check_branch
        %230 = sbr.rel (%p228) target = $region44
      $region43: #{res_block.1} parent=39 // pred_region
        %p231 = scmp.lt.s32.totalorder %s13, 1
        %s232 = scalar_select %p231, %s13, 1
        %s233 = smul.addr %s232, 2
        %s234 = smul.addr %s233, 4
        %s235 = scalar_lea.vmem %s0, %s234
      $region44: #{res_block.1} parent=39 // pred_fallthru
        _
    $region40: #{res_block.1} parent=5 // pred_fallthru
      _
    %p236 = scmp.le.s32.totalorder 1, %s13
    %p237 = scmp.lt.s32.totalorder %s13, 3
    %p238 = pnand %p236, %p237
    %p239 = pneg %p238
    // Predicated region
    $region45: #{res_block.1} parent=5 // pred_check
      _
    $region46: #{res_block.1} parent=5 // pred_check_branch
      %241 = sbr.rel (%p238) target = $region48
    $region47: #{res_block.1} parent=5 // pred_region
      %s242 = ssub.s32 %s13, 1
      %p243 = scmp.lt.s32.totalorder %s18, 1
      %s244 = scalar_select %p243, %s18, 1
      %s245 = smul.addr %s244, 2
      %s246 = smul.addr %s245, 4
      %s247 = scalar_lea.vmem %s0, %s246
      %p248 = pneg %p39
      %p249 = pneg %p36
      %p250 = pneg %p60
      %p251 = pneg %p57
      %p252 = pneg %p81
      %p253 = pneg %p78
      %p254 = pneg %p102
      %p255 = pneg %p99
      %p256 = pneg %p123
      %p257 = pneg %p120
      %p258 = pneg %p144
      %p259 = pneg %p141
      %p260 = pneg %p165
      %p261 = pneg %p162
      %p262 = pneg %p191
      %p263 = pneg %p188
      %p264 = scmp.lt.s32.totalorder %s18, 1
      %s265 = scalar_select %p264, %s18, 1
      %s266 = smul.addr %s265, 2
      %s267 = smul.addr %s266, 4
      %s268 = scalar_lea.vmem %s7, %s267
      %p269 = scmp.lt.s32.totalorder %s18, 1
      %s270 = scalar_select %p269, %s18, 1
      %s271 = smul.addr %s270, 2
      %s272 = smul.addr %s271, 4
      %s273 = scalar_lea.vmem %s0, %s272
      %p274 = scmp.lt.s32.totalorder %s18, 1
      %s275 = scalar_select %p274, %s18, 1
      %s276 = smul.addr %s275, 2
      %s277 = smul.addr %s276, 4
      %s278 = scalar_lea.vmem %s7, %s277
      %v279 = vld [vmem:[%s273] sm:$0xff]
      %v280 = vld [vmem:[%s1] sm:$0xf]
      %v281 = vld [vmem:[%s2] sm:$0xf]
      %283 = vset.pattern.permute.xlu0 0
      %284 = vperm.xlu0 %283, %v281
      %v285 = vpop.permute.xlu0 %284
      %v288 = vcombine.high %v279, %v279
      %vm289 = vcmask 31744
      %v291 = vsel %vm289, %v280, 0
      %vm293 = vcmask 1043456
      %v294 = vsel %vm293, %v279, 0
      %v296 = vsel %vm293, %v288, 0
      %298 = vmatprep.subr.mxu0 %v296
      %299 = vmatpush1.msra.mxu0 %v294
      %300 = vmatprep.subr.mxu0 0.0
      %301 = vmatpush1.msra.mxu0 0.0
      %302 = vmatprep.subr.mxu0 0.0
      %303 = vmatpush1.msra.mxu0 0.0
      %304 = vmatprep.subr.mxu0 0.0
      %305 = vmatpush1.msra.mxu0 0.0
      %306 = vmatprep.subr.mxu0 0.0
      %307 = vmatpush1.msra.mxu0 0.0
      %308 = vmatprep.subr.mxu0 0.0
      %309 = vmatpush1.msra.mxu0 0.0
      %310 = vmatprep.subr.mxu0 0.0
      %311 = vmatpush1.msra.mxu0 0.0
      %312 = vmatprep.subr.mxu0 0.0
      %313 = vmatpush1.msra.mxu0 0.0
      %314 = vmatprep.subr.mxu0 0.0
      %315 = vmatpush1.msra.mxu0 0.0
      %316 = vmatprep.subr.mxu0 0.0
      %317 = vmatpush1.msra.mxu0 0.0
      %318 = vmatprep.subr.mxu0 0.0
      %319 = vmatpush1.msra.mxu0 0.0
      %320 = vmatprep.subr.mxu0 0.0
      %321 = vmatpush1.msra.mxu0 0.0
      %322 = vmatprep.subr.mxu0 0.0
      %323 = vmatpush1.msra.mxu0 0.0
      %324 = vmatprep.subr.mxu0 0.0
      %325 = vmatpush1.msra.mxu0 0.0
      %326 = vmatprep.subr.mxu0 0.0
      %327 = vmatpush1.msra.mxu0 0.0
      %328 = vmatprep.subr.mxu0 0.0
      %329 = vmatpush1.msra.mxu0 0.0
      %330 = vmatprep.subr.mxu0 0.0
      %331 = vmatpush1.msra.mxu0 0.0
      %332 = vmatprep.subr.mxu0 0.0
      %333 = vmatpush1.msra.mxu0 0.0
      %334 = vmatprep.subr.mxu0 0.0
      %335 = vmatpush1.msra.mxu0 0.0
      %336 = vmatprep.subr.mxu0 0.0
      %337 = vmatpush1.msra.mxu0 0.0
      %338 = vmatprep.subr.mxu0 0.0
      %339 = vmatpush1.msra.mxu0 0.0
      %340 = vmatprep.subr.mxu0 0.0
      %341 = vmatpush1.msra.mxu0 0.0
      %342 = vmatprep.subr.mxu0 0.0
      %343 = vmatpush1.msra.mxu0 0.0
      %344 = vmatprep.subr.mxu0 0.0
      %345 = vmatpush1.msra.mxu0 0.0
      %346 = vmatprep.subr.mxu0 0.0
      %347 = vmatpush1.msra.mxu0 0.0
      %348 = vmatprep.subr.mxu0 0.0
      %349 = vmatpush1.msra.mxu0 0.0
      %350 = vmatprep.subr.mxu0 0.0
      %351 = vmatpush1.msra.mxu0 0.0
      %352 = vmatprep.subr.mxu0 0.0
      %353 = vmatpush1.msra.mxu0 0.0
      %354 = vmatprep.subr.mxu0 0.0
      %355 = vmatpush1.msra.mxu0 0.0
      %356 = vmatprep.subr.mxu0 0.0
      %357 = vmatpush1.msra.mxu0 0.0
      %358 = vmatprep.subr.mxu0 0.0
      %359 = vmatpush1.msra.mxu0 0.0
      %360 = vmatprep.subr.mxu0 0.0
      %361 = vmatpush1.msra.mxu0 0.0
      %362 = vmatprep.mubr.f32.mxu0 0.0
      %363 = vmatmul.mubr.f32.gmra.mrb[0].mxu0 %v291
      %v364 = vpop.f32.mrb[0].mxu0
      %v365 = vadd.f32 %v285, %v364
      %v366 = vpop.f32.mrb[0].mxu0
      %v367 = vadd.f32 %v285, %v366
      %368 = vdwg.mxu0
      %v369 = vadd.f32 %v365, 3.0
      %v370 = vadd.f32 %v367, 3.0
      %v371 = vmax.f32 %v369, 0.0
      %v372 = vmax.f32 %v370, 0.0
      %v373 = vmin.f32 %v371, 6.0
      %v374 = vmin.f32 %v372, 6.0
      %v375 = vmul.f32 %v365, %v373
      %v376 = vmul.f32 %v367, %v374
      %v377 = vmul.f32 %v375, 0.16666667
      %v378 = vmul.f32 %v376, 0.16666667
      %379 = vst [vmem:[#allocation2] sm:$0xf] 0.0
      %380 = vst [vmem:[#allocation2 + $0xc] sm:$0xf] 0.0
      %v383 = vcombine.low %v377, %v378
      %385 = vst [vmem:[#allocation2 + $0x4] sm:$0xff] %v383
      %v386 = vlaneseq
      %v387 = vand.u32 %v386, 127
      %v388 = vadd.s32 %v387, 128
      %vm389 = vcmp.lt.s32.totalorder %v387, 0
      %v390 = vsub.s32 0, %v387
      %v391 = vsel %vm389, %v390, %v387
      %v392 = vshrl.u32 %v391, 4
      %v393 = vand.u32 %v391, 15
      %v394 = vsub.s32 0, %v393
      %v395 = vsel %vm389, %v394, %v393
      %vm396 = vcmp.lt.s32.totalorder %v388, 0
      %v397 = vsub.s32 0, %v388
      %v398 = vsel %vm396, %v397, %v388
      %v399 = vshrl.u32 %v398, 4
      %v400 = vand.u32 %v398, 15
      %v401 = vsub.s32 0, %v400
      %v402 = vsel %vm396, %v401, %v400
      %vm403 = vcmp.ne.s32.totalorder %v395, 0
      %vm404 = vcmp.ne.s32.totalorder %v402, 0
      %vm405 = vcmp.lt.s32.totalorder %v395, 0
      %vm406 = vcmp.lt.s32.totalorder %v402, 0
      %vm407 = vmand %vm405, %vm403
      %vm408 = vmand %vm406, %vm404
      %v409 = vadd.s32 %v395, 16
      %v410 = vadd.s32 %v402, 16
      %v411 = vsel %vm407, %v409, %v395
      %v412 = vsel %vm408, %v410, %v402
      %v413 = vld [vmem:[#allocation2] sm:$0xff]
      %v414 = vld [vmem:[#allocation2 + $0x8] sm:$0xf]
      %v415 = vadd.s32 %v411, 4294967295
      %v416 = vadd.s32 %v412, 4294967295
      %vm417 = vcmp.ge.s32.totalorder %v415, 0
      %vm418 = vcmp.ge.s32.totalorder %v416, 0
      %vm419 = vcmp.lt.s32.totalorder %v415, 16
      %vm420 = vcmp.lt.s32.totalorder %v416, 16
      %vm421 = vmand %vm417, %vm419
      %vm422 = vmand %vm418, %vm420
      %v423 = vsel %vm421, 1, 0
      %v424 = vsel %vm422, 1, 0
      %vm425 = vcmp.eq.s32.totalorder %v423, 1
      %vm426 = vcmp.eq.s32.totalorder %v424, 1
      %v429 = vcombine.high %v413, %v413
      %430 = vrot.lane.b32.xlu0 %v413, 17
      %v431 = vpop.permute.xlu0 %430
      %432 = vrot.lane.b32.xlu0 %v429, 17
      %v433 = vpop.permute.xlu0 %432
      %434 = vrot.lane.b32.xlu0 %v414, 17
      %v435 = vpop.permute.xlu0 %434
      %vm436 = vcmask 138240
      %v437 = vsel %vm436, %v431, %v433
      %v438 = vsel %vm436, %v433, %v435
      %v441 = vsel %vm425, %v437, 0.0
      %v442 = vsel %vm426, %v438, 0.0
      %v443 = vld [vmem:[%s3] sm:$0xf]
      %445 = vset.pattern.permute.xlu0 0
      %446 = vperm.xlu0 %445, %v443
      %v447 = vpop.permute.xlu0 %446
      %v449 = vmul.f32 %v441, %v447
      %v450 = vmul.f32 %v442, %v447
      %v451 = vadd.f32 %v449, 0.0
      %v452 = vadd.f32 %v450, 0.0
      %v453 = vld [vmem:[#allocation2] sm:$0xff]
      %v454 = vld [vmem:[#allocation2 + $0x8] sm:$0xf]
      %s455 = scalar_lea.vmem %s3, 4
      %v456 = vld [vmem:[%s455] sm:$0xf]
      %458 = vset.pattern.permute.xlu0 0
      %459 = vperm.xlu0 %458, %v456
      %v460 = vpop.permute.xlu0 %459
      %v462 = vunpack.c.l.s4 839922192
      %v463 = vunpack.c.0.s8 %v462
      %v464 = vlaneseq
      %v465 = vshrl.u32 %v464, 7
      %v466 = vsub.s32 %v463, %v465
      %v467 = vrot.slane %v460, %v466
      %v469 = vmul.f32 %v453, %v467
      %v470 = vmul.f32 %v454, %v467
      %v473 = vcombine.high %v469, %v469
      %474 = vrot.lane.b32.xlu0 %v469, 16
      %v475 = vpop.permute.xlu0 %474
      %476 = vrot.lane.b32.xlu0 %v473, 16
      %v477 = vpop.permute.xlu0 %476
      %478 = vrot.lane.b32.xlu0 %v470, 16
      %v479 = vpop.permute.xlu0 %478
      %vm480 = vcmask 130048
      %v481 = vsel %vm480, %v475, %v477
      %v482 = vsel %vm480, %v477, %v479
      %v485 = vadd.f32 %v451, %v481
      %v486 = vadd.f32 %v452, %v482
      %v487 = vld [vmem:[#allocation2] sm:$0xff]
      %v488 = vld [vmem:[#allocation2 + $0x8] sm:$0xf]
      %v489 = vadd.s32 %v411, 1
      %v490 = vadd.s32 %v412, 1
      %vm491 = vcmp.ge.s32.totalorder %v489, 0
      %vm492 = vcmp.ge.s32.totalorder %v490, 0
      %vm493 = vcmp.lt.s32.totalorder %v489, 16
      %vm494 = vcmp.lt.s32.totalorder %v490, 16
      %vm495 = vmand %vm491, %vm493
      %vm496 = vmand %vm492, %vm494
      %v497 = vsel %vm495, 1, 0
      %v498 = vsel %vm496, 1, 0
      %vm499 = vcmp.eq.s32.totalorder %v497, 1
      %vm500 = vcmp.eq.s32.totalorder %v498, 1
      %v503 = vcombine.high %v487, %v487
      %504 = vrot.lane.b32.xlu0 %v487, 15
      %v505 = vpop.permute.xlu0 %504
      %506 = vrot.lane.b32.xlu0 %v503, 15
      %v507 = vpop.permute.xlu0 %506
      %508 = vrot.lane.b32.xlu0 %v488, 15
      %v509 = vpop.permute.xlu0 %508
      %vm510 = vcmask 121856
      %v511 = vsel %vm510, %v505, %v507
      %v512 = vsel %vm510, %v507, %v509
      %v515 = vsel %vm499, %v511, 0.0
      %v516 = vsel %vm500, %v512, 0.0
      %s517 = scalar_lea.vmem %s3, 8
      %v518 = vld [vmem:[%s517] sm:$0xf]
      %520 = vset.pattern.permute.xlu0 0
      %521 = vperm.xlu0 %520, %v518
      %v522 = vpop.permute.xlu0 %521
      %v524 = vmul.f32 %v515, %v522
      %v525 = vmul.f32 %v516, %v522
      %v526 = vadd.f32 %v485, %v524
      %v527 = vadd.f32 %v486, %v525
      %v528 = vld [vmem:[#allocation2] sm:$0xff]
      %v529 = vld [vmem:[#allocation2 + $0x8] sm:$0xf]
      %v532 = vcombine.high %v528, %v528
      %533 = vrot.lane.b32.xlu0 %v528, 1
      %v534 = vpop.permute.xlu0 %533
      %535 = vrot.lane.b32.xlu0 %v532, 1
      %v536 = vpop.permute.xlu0 %535
      %537 = vrot.lane.b32.xlu0 %v529, 1
      %v538 = vpop.permute.xlu0 %537
      %vm539 = vcmask 7168
      %v540 = vsel %vm539, %v534, %v536
      %v541 = vsel %vm539, %v536, %v538
      %v544 = vsel %vm425, %v540, 0.0
      %v545 = vsel %vm426, %v541, 0.0
      %s546 = scalar_lea.vmem %s3, 12
      %v547 = vld [vmem:[%s546] sm:$0xf]
      %549 = vset.pattern.permute.xlu0 0
      %550 = vperm.xlu0 %549, %v547
      %v551 = vpop.permute.xlu0 %550
      %v553 = vmul.f32 %v544, %v551
      %v554 = vmul.f32 %v545, %v551
      %v555 = vadd.f32 %v526, %v553
      %v556 = vadd.f32 %v527, %v554
      %v557 = vld [vmem:[#allocation2 + $0x4] sm:$0xff]
      %s558 = scalar_lea.vmem %s3, 16
      %v559 = vld [vmem:[%s558] sm:$0xf]
      %561 = vset.pattern.permute.xlu0 0
      %562 = vperm.xlu0 %561, %v559
      %v563 = vpop.permute.xlu0 %562
      %v565 = vunpack.c.l.s4 839922192
      %v566 = vunpack.c.0.s8 %v565
      %v567 = vlaneseq
      %v568 = vshrl.u32 %v567, 7
      %v569 = vsub.s32 %v566, %v568
      %v570 = vrot.slane %v563, %v569
      %v572 = vmul.f32 %v557, %v570
      %v574 = vcombine.high %v572, %v572
      %v576 = vadd.f32 %v555, %v572
      %v577 = vadd.f32 %v556, %v574
      %v578 = vld [vmem:[#allocation2 + $0x4] sm:$0xff]
      %v579 = vld [vmem:[#allocation2 + $0xc] sm:$0xf]
      %v582 = vcombine.high %v578, %v578
      %583 = vrot.lane.b32.xlu0 %v578, 127
      %v584 = vpop.permute.xlu0 %583
      %585 = vrot.lane.b32.xlu0 %v582, 127
      %v586 = vpop.permute.xlu0 %585
      %587 = vrot.lane.b32.xlu0 %v579, 127
      %v588 = vpop.permute.xlu0 %587
      %vm589 = vcmask 1039360
      %v590 = vsel %vm589, %v584, %v586
      %v591 = vsel %vm589, %v586, %v588
      %v594 = vsel %vm499, %v590, 0.0
      %v595 = vsel %vm500, %v591, 0.0
      %s596 = scalar_lea.vmem %s3, 20
      %v597 = vld [vmem:[%s596] sm:$0xf]
      %599 = vset.pattern.permute.xlu0 0
      %600 = vperm.xlu0 %599, %v597
      %v601 = vpop.permute.xlu0 %600
      %v603 = vmul.f32 %v594, %v601
      %v604 = vmul.f32 %v595, %v601
      %v605 = vadd.f32 %v576, %v603
      %v606 = vadd.f32 %v577, %v604
      %v607 = vld [vmem:[#allocation2 + $0x4] sm:$0xff]
      %v608 = vld [vmem:[#allocation2 + $0xc] sm:$0xf]
      %v611 = vcombine.high %v607, %v607
      %612 = vrot.lane.b32.xlu0 %v607, 113
      %v613 = vpop.permute.xlu0 %612
      %614 = vrot.lane.b32.xlu0 %v611, 113
      %v615 = vpop.permute.xlu0 %614
      %616 = vrot.lane.b32.xlu0 %v608, 113
      %v617 = vpop.permute.xlu0 %616
      %vm618 = vcmask 924672
      %v619 = vsel %vm618, %v613, %v615
      %v620 = vsel %vm618, %v615, %v617
      %v623 = vsel %vm425, %v619, 0.0
      %v624 = vsel %vm426, %v620, 0.0
      %s625 = scalar_lea.vmem %s3, 24
      %v626 = vld [vmem:[%s625] sm:$0xf]
      %628 = vset.pattern.permute.xlu0 0
      %629 = vperm.xlu0 %628, %v626
      %v630 = vpop.permute.xlu0 %629
      %v632 = vmul.f32 %v623, %v630
      %v633 = vmul.f32 %v624, %v630
      %v634 = vadd.f32 %v605, %v632
      %v635 = vadd.f32 %v606, %v633
      %v636 = vld [vmem:[#allocation2 + $0x4] sm:$0xff]
      %v637 = vld [vmem:[#allocation2 + $0xc] sm:$0xf]
      %s638 = scalar_lea.vmem %s3, 28
      %v639 = vld [vmem:[%s638] sm:$0xf]
      %641 = vset.pattern.permute.xlu0 0
      %642 = vperm.xlu0 %641, %v639
      %v643 = vpop.permute.xlu0 %642
      %v645 = vunpack.c.l.s4 839922192
      %v646 = vunpack.c.0.s8 %v645
      %v647 = vlaneseq
      %v648 = vshrl.u32 %v647, 7
      %v649 = vsub.s32 %v646, %v648
      %v650 = vrot.slane %v643, %v649
      %v652 = vmul.f32 %v636, %v650
      %v653 = vmul.f32 %v637, %v650
      %v656 = vcombine.high %v652, %v652
      %657 = vrot.lane.b32.xlu0 %v652, 112
      %v658 = vpop.permute.xlu0 %657
      %659 = vrot.lane.b32.xlu0 %v656, 112
      %v660 = vpop.permute.xlu0 %659
      %661 = vrot.lane.b32.xlu0 %v653, 112
      %v662 = vpop.permute.xlu0 %661
      %vm663 = vcmask 916480
      %v664 = vsel %vm663, %v658, %v660
      %v665 = vsel %vm663, %v660, %v662
      %v668 = vadd.f32 %v634, %v664
      %v669 = vadd.f32 %v635, %v665
      %v670 = vld [vmem:[#allocation2 + $0x4] sm:$0xff]
      %v671 = vld [vmem:[#allocation2 + $0xc] sm:$0xf]
      %v674 = vcombine.high %v670, %v670
      %675 = vrot.lane.b32.xlu0 %v670, 111
      %v676 = vpop.permute.xlu0 %675
      %677 = vrot.lane.b32.xlu0 %v674, 111
      %v678 = vpop.permute.xlu0 %677
      %679 = vrot.lane.b32.xlu0 %v671, 111
      %v680 = vpop.permute.xlu0 %679
      %vm681 = vcmask 908288
      %v682 = vsel %vm681, %v676, %v678
      %v683 = vsel %vm681, %v678, %v680
      %v686 = vsel %vm499, %v682, 0.0
      %v687 = vsel %vm500, %v683, 0.0
      %s688 = scalar_lea.vmem %s3, 32
      %v689 = vld [vmem:[%s688] sm:$0xf]
      %691 = vset.pattern.permute.xlu0 0
      %692 = vperm.xlu0 %691, %v689
      %v693 = vpop.permute.xlu0 %692
      %v695 = vmul.f32 %v686, %v693
      %v696 = vmul.f32 %v687, %v693
      %v697 = vadd.f32 %v668, %v695
      %v698 = vadd.f32 %v669, %v696
      %v699 = vld [vmem:[%s4] sm:$0xf]
      %701 = vset.pattern.permute.xlu0 0
      %702 = vperm.xlu0 %701, %v699
      %v703 = vpop.permute.xlu0 %702
      %v705 = vadd.f32 %v697, %v703
      %v706 = vadd.f32 %v698, %v703
      %v707 = vadd.f32 %v705, 3.0
      %v708 = vadd.f32 %v706, 3.0
      %v709 = vmax.f32 %v707, 0.0
      %v710 = vmax.f32 %v708, 0.0
      %v711 = vmin.f32 %v709, 6.0
      %v712 = vmin.f32 %v710, 6.0
      %v713 = vmul.f32 %v705, %v711
      %v714 = vmul.f32 %v706, %v712
      %v715 = vmul.f32 %v713, 0.16666667
      %v716 = vmul.f32 %v714, 0.16666667
      %v717 = vld [vmem:[%s5] sm:$0xf]
      %v718 = vld [vmem:[%s6] sm:$0xf]
      %720 = vset.pattern.permute.xlu0 0
      %721 = vperm.xlu0 %720, %v718
      %v722 = vpop.permute.xlu0 %721
      %v725 = vsel %vm289, %v717, 0
      %v728 = vsel %vm293, %v715, 0
      %v731 = vsel %vm293, %v716, 0
      %733 = vmatprep.subr.mxu0 %v731
      %734 = vmatpush1.msra.mxu0 %v728
      %735 = vmatprep.subr.mxu0 0.0
      %736 = vmatpush1.msra.mxu0 0.0
      %737 = vmatprep.subr.mxu0 0.0
      %738 = vmatpush1.msra.mxu0 0.0
      %739 = vmatprep.subr.mxu0 0.0
      %740 = vmatpush1.msra.mxu0 0.0
      %741 = vmatprep.subr.mxu0 0.0
      %742 = vmatpush1.msra.mxu0 0.0
      %743 = vmatprep.subr.mxu0 0.0
      %744 = vmatpush1.msra.mxu0 0.0
      %745 = vmatprep.subr.mxu0 0.0
      %746 = vmatpush1.msra.mxu0 0.0
      %747 = vmatprep.subr.mxu0 0.0
      %748 = vmatpush1.msra.mxu0 0.0
      %749 = vmatprep.subr.mxu0 0.0
      %750 = vmatpush1.msra.mxu0 0.0
      %751 = vmatprep.subr.mxu0 0.0
      %752 = vmatpush1.msra.mxu0 0.0
      %753 = vmatprep.subr.mxu0 0.0
      %754 = vmatpush1.msra.mxu0 0.0
      %755 = vmatprep.subr.mxu0 0.0
      %756 = vmatpush1.msra.mxu0 0.0
      %757 = vmatprep.subr.mxu0 0.0
      %758 = vmatpush1.msra.mxu0 0.0
      %759 = vmatprep.subr.mxu0 0.0
      %760 = vmatpush1.msra.mxu0 0.0
      %761 = vmatprep.subr.mxu0 0.0
      %762 = vmatpush1.msra.mxu0 0.0
      %763 = vmatprep.subr.mxu0 0.0
      %764 = vmatpush1.msra.mxu0 0.0
      %765 = vmatprep.subr.mxu0 0.0
      %766 = vmatpush1.msra.mxu0 0.0
      %767 = vmatprep.subr.mxu0 0.0
      %768 = vmatpush1.msra.mxu0 0.0
      %769 = vmatprep.subr.mxu0 0.0
      %770 = vmatpush1.msra.mxu0 0.0
      %771 = vmatprep.subr.mxu0 0.0
      %772 = vmatpush1.msra.mxu0 0.0
      %773 = vmatprep.subr.mxu0 0.0
      %774 = vmatpush1.msra.mxu0 0.0
      %775 = vmatprep.subr.mxu0 0.0
      %776 = vmatpush1.msra.mxu0 0.0
      %777 = vmatprep.subr.mxu0 0.0
      %778 = vmatpush1.msra.mxu0 0.0
      %779 = vmatprep.subr.mxu0 0.0
      %780 = vmatpush1.msra.mxu0 0.0
      %781 = vmatprep.subr.mxu0 0.0
      %782 = vmatpush1.msra.mxu0 0.0
      %783 = vmatprep.subr.mxu0 0.0
      %784 = vmatpush1.msra.mxu0 0.0
      %785 = vmatprep.subr.mxu0 0.0
      %786 = vmatpush1.msra.mxu0 0.0
      %787 = vmatprep.subr.mxu0 0.0
      %788 = vmatpush1.msra.mxu0 0.0
      %789 = vmatprep.subr.mxu0 0.0
      %790 = vmatpush1.msra.mxu0 0.0
      %791 = vmatprep.subr.mxu0 0.0
      %792 = vmatpush1.msra.mxu0 0.0
      %793 = vmatprep.subr.mxu0 0.0
      %794 = vmatpush1.msra.mxu0 0.0
      %795 = vmatprep.subr.mxu0 0.0
      %796 = vmatpush1.msra.mxu0 0.0
      %797 = vmatprep.mubr.f32.mxu0 0.0
      %798 = vmatmul.mubr.f32.gmra.mrb[0].mxu0 %v725
      %v799 = vpop.f32.mrb[0].mxu0
      %v800 = vadd.f32 %v722, %v799
      %v801 = vpop.f32.mrb[0].mxu0
      %v802 = vadd.f32 %v722, %v801
      %803 = vdwg.mxu0
      %v806 = vcombine.low %v800, %v802
      %v808 = vadd.f32 %v279, %v806
      %809 = vst [vmem:[%s278] sm:$0xff] %v808
      %p810 = scmp.lt.s32.totalorder %s18, 1
      %s811 = scalar_select %p810, %s18, 1
      %s812 = smul.addr %s811, 2
      %s813 = smul.addr %s812, 4
      %s814 = scalar_lea.vmem %s7, %s813
      // Predicated region
      $region49: #{res_block.1} parent=47 // pred_check
        %p815 = pneg %p188
      $region50: #{res_block.1} parent=47 // pred_check_branch
        %817 = sbr.rel (%p815) target = $region52
      $region51: #{res_block.1} parent=47 // pred_region
        _
      $region52: #{res_block.1} parent=47 // pred_fallthru
        _
    $region48: #{res_block.1} parent=5 // pred_fallthru
      _
    %p818 = scmp.le.s32.totalorder 2, %s13
    // Predicated region
    $region53: #{res_block.1} parent=5 // pred_check
      %p819 = pneg %p818
    $region54: #{res_block.1} parent=5 // pred_check_branch
      %821 = sbr.rel (%p819) target = $region56
    $region55: #{res_block.1} parent=5 // pred_region
      %s822 = ssub.s32 %s13, 2
      // Predicated region
      $region57: #{res_block.1} parent=55 // pred_check
        %p823 = pneg %p194
      $region58: #{res_block.1} parent=55 // pred_check_branch
        %825 = sbr.rel (%p823) target = $region60
      $region59: #{res_block.1} parent=55 // pred_region
        %p826 = scmp.lt.s32.totalorder %s19, 1
        %s827 = scalar_select %p826, %s19, 1
        %s828 = smul.addr %s827, 2
        %s829 = smul.addr %s828, 4
        %s830 = scalar_lea.vmem %s7, %s829
      $region60: #{res_block.1} parent=55 // pred_fallthru
        _
    $region56: #{res_block.1} parent=5 // pred_fallthru
      _
  $region6: #{res_block.1} parent=0 // loop_footer
    %s17 = sadd.s32 1, %s13
  $region7: #{res_block.1} parent=0 // loop_footer_branch
    %12 = sbr.rel target = $region3
  $region8: #{res_block.1} parent=0 // loop_exit
    _

</llo_original>
